<compile_context>
chip_gen: v7x
topology: tpu7x:2x2x1
jax: 0.10.0
libtpu: 0.0.40
codegen_flags: <defaults>
</compile_context>

<pallas_src>
import functools

import jax
import jax.numpy as jnp
from jax import lax
from jax.experimental import pallas as pl
from jax.experimental.pallas import tpu as pltpu


_LANE = 128
_SUBLANE = 8
_NEG_MASK = -1e30          # finite: exp underflows to exactly 0 in f32


def _round_up(x, m):
    return (x + m - 1) // m * m


# ---------------------------------------------------------------------------
# Kernel 1: projection heads + L2 normalize (+ 1/T fold, + positive logits)
# ---------------------------------------------------------------------------
def _make_proj_kernel(temperature, eps=1e-12):
    inv_t = 1.0 / float(temperature)
    eps_sq = float(eps) * float(eps)   # F.normalize clamps ||z|| at eps

    def kernel(fs_ref, ft_ref,
               w1s_ref, b1s_ref, w2s_ref, b2s_ref,
               w1t_ref, b1t_ref, w2t_ref, b2t_ref,
               zs_ref, zt_ref, lpos_ref):
        def head(x_ref, w1_ref, b1_ref, w2_ref, b2_ref):
            # Matmul operands in the prepared weight dtype (bf16 MXU fast path
            # on v6e/v7x if prepared as bf16); accumulate + epilogue in f32.
            x = x_ref[...].astype(w1_ref.dtype)
            h = jnp.dot(x, w1_ref[...], preferred_element_type=jnp.float32)
            h = jnp.maximum(h + b1_ref[...], 0.0)
            z = jnp.dot(h.astype(w2_ref.dtype), w2_ref[...],
                        preferred_element_type=jnp.float32) + b2_ref[...]
            # F.normalize(p=2, dim=1): one EUP rsqrt + one VPU mul.
            z = z * lax.rsqrt(
                jnp.maximum(jnp.sum(z * z, axis=1, keepdims=True), eps_sq))
            return z

        z_s = head(fs_ref, w1s_ref, b1s_ref, w2s_ref, b2s_ref)
        z_t = head(ft_ref, w1t_ref, b1t_ref, w2t_ref, b2t_ref)  # .detach(): same fwd value

        # positive logits, already temperature-scaled
        lpos_ref[...] = jnp.sum(z_s * z_t, axis=1, keepdims=True) * inv_t
        # fold 1/T into z_s once so the O(N^2) score matmul needs no extra mul
        zs_ref[...] = (z_s * inv_t).astype(zs_ref.dtype)
        zt_ref[...] = z_t.astype(zt_ref.dtype)

    return kernel


# ---------------------------------------------------------------------------
# Kernel 2: flash-style online-logsumexp over (query tile, key tile) grid
# ---------------------------------------------------------------------------
def _make_nce_kernel(tk, n_valid, n_pad):
    mask_needed = n_pad > n_valid

    def kernel(lpos_ref, zs_ref, zt_ref, out_ref, m_ref, l_ref):
        ki = pl.program_id(1)

        @pl.when(ki == 0)
        def _():
            m_ref[...] = jnp.full_like(m_ref, -jnp.inf)
            l_ref[...] = jnp.zeros_like(l_ref)

        # scores (1/T already folded into z_s by the projection kernel)
        s = lax.dot_general(zs_ref[...], zt_ref[...],
                            (((1,), (1,)), ((), ())),
                            preferred_element_type=jnp.float32)     # (tq, tk)
        if mask_needed:
            # padded key rows must not contribute to the logsumexp
            col = ki * tk + lax.broadcasted_iota(jnp.int32, s.shape, 1)
            s = jnp.where(col < n_valid, s, _NEG_MASK)

        m_prev = m_ref[...]
        m_new = jnp.maximum(m_prev, jnp.max(s, axis=1, keepdims=True))
        alpha = jnp.exp(m_prev - m_new)
        p = jnp.exp(s - m_new)
        l_ref[...] = alpha * l_ref[...] + jnp.sum(p, axis=1, keepdims=True)
        m_ref[...] = m_new

        @pl.when(ki == pl.num_programs(1) - 1)
        def _():
            # No diagonal mask needed: diag(l_neg) == l_pos, so the logsumexp
            # over the unmasked row equals the reference's logsumexp over
            # [l_pos, -inf-masked l_neg].  cross_entropy(labels=0) per sample:
            out_ref[...] = m_ref[...] + jnp.log(l_ref[...]) - lpos_ref[...]

    return kernel


# ---------------------------------------------------------------------------
# Parameter init / one-time packing
# ---------------------------------------------------------------------------
def init_projection_head(key, input_dim, output_dim):
    """Deterministic synthetic init; weight shapes follow nn.Linear (out, in)."""
    hidden_dim = max(output_dim, input_dim // 2) if input_dim > 0 else output_dim
    k1, k2, k3, k4 = jax.random.split(key, 4)
    w1 = jax.random.normal(k1, (hidden_dim, input_dim), jnp.float32) * (input_dim ** -0.5)
    b1 = jax.random.normal(k2, (hidden_dim,), jnp.float32) * 0.01
    w2 = jax.random.normal(k3, (output_dim, hidden_dim), jnp.float32) * (hidden_dim ** -0.5)
    b2 = jax.random.normal(k4, (output_dim,), jnp.float32) * 0.01
    return dict(w1=w1, b1=b1, w2=w2, b2=b2)


def prepare_crd_params(params_s, params_t, dtype=jnp.float32):
    """One-time packing (hoisted out of the hot path).

    Per head: transpose nn.Linear weights to (in, out) layout and zero-pad the
    hidden and feat dims up to multiples of 128 (lane-dense, mathematically
    inert).  Biases stay f32 (added after the f32-accumulated matmul); weights
    may be prepared in bf16 for the v6e/v7x MXU fast path.
    """
    def prep_head(p):
        w1, b1, w2, b2 = p["w1"], p["b1"], p["w2"], p["b2"]
        hid, in_dim = w1.shape        # nn.Linear stores (out, in)
        feat = w2.shape[0]
        hid_pad = _round_up(max(hid, _SUBLANE), _LANE)
        feat_pad = _round_up(max(feat, _SUBLANE), _LANE)
        w1_p = jnp.zeros((in_dim, hid_pad), jnp.float32).at[:, :hid].set(w1.T)
        b1_p = jnp.zeros((1, hid_pad), jnp.float32).at[0, :hid].set(b1)
        w2_p = jnp.zeros((hid_pad, feat_pad), jnp.float32).at[:hid, :feat].set(w2.T)
        b2_p = jnp.zeros((1, feat_pad), jnp.float32).at[0, :feat].set(b2)
        return (w1_p.astype(dtype), b1_p, w2_p.astype(dtype), b2_p)

    w1s, b1s, w2s, b2s = prep_head(params_s)
    w1t, b1t, w2t, b2t = prep_head(params_t)
    assert w2s.shape[1] == w2t.shape[1], "feat_dim must match across heads"
    return dict(w1s=w1s, b1s=b1s, w2s=w2s, b2s=b2s,
                w1t=w1t, b1t=b1t, w2t=w2t, b2t=b2t)


# ---------------------------------------------------------------------------
# Wrapper
# ---------------------------------------------------------------------------
def _choose_tiles(n):
    # v7x-safe budget: (tq, tk) = (256, 512) -> 512 KiB f32 score tile, well
    # under half of v7x's 32 MiB scoped VMEM with Buffered(2) key tiles.
    if n >= 512:
        tq, tk = 256, 512
        n_pad = _round_up(n, 512)
    else:
        n_pad = _round_up(n, _SUBLANE)
        tq = tk = n_pad
    return tq, tk, n_pad


@functools.partial(jax.jit, static_argnames=("temperature",))
def crd_loss_pallas(f_s, f_t, packed, temperature):
    n, s_dim = f_s.shape
    t_dim = f_t.shape[1]
    w1s, b1s, w2s, b2s = packed["w1s"], packed["b1s"], packed["w2s"], packed["b2s"]
    w1t, b1t, w2t, b2t = packed["w1t"], packed["b1t"], packed["w2t"], packed["b2t"]
    hs_pad, ht_pad = w1s.shape[1], w1t.shape[1]
    feat_pad = w2s.shape[1]
    cdtype = w1s.dtype
    itemsize = jnp.dtype(cdtype).itemsize

    tq, tk, n_pad = _choose_tiles(n)
    if n_pad != n:
        f_s = jnp.pad(f_s, ((0, n_pad - n), (0, 0)))
        f_t = jnp.pad(f_t, ((0, n_pad - n), (0, 0)))

    # ---- call 1: projection + normalize (row-tiled, weights resident) ------
    weights = (w1s, b1s, w2s, b2s, w1t, b1t, w2t, b2t)
    weight_specs = [pl.BlockSpec(w.shape, lambda i: (0, 0)) for w in weights]
    weight_bytes = sum(int(w.size) * jnp.dtype(w.dtype).itemsize for w in weights)
    # TODO(synk): if the head weights themselves exceed VMEM (very large
    # s_dim/t_dim), fc1/fc2 would additionally need a K-tiled accumulator grid.
    proj_flops = 2 * n_pad * (s_dim * hs_pad + hs_pad * feat_pad
                              + t_dim * ht_pad + ht_pad * feat_pad)
    proj_bytes = (n_pad * (s_dim + t_dim) * 4 + weight_bytes
                  + 2 * n_pad * feat_pad * itemsize + n_pad * 4)
    proj_vmem = int(weight_bytes
                    + 2 * tq * (s_dim + t_dim) * 4
                    + 2 * tq * (2 * feat_pad + 1) * max(itemsize, 4)
                    + 2 * tq * max(hs_pad, ht_pad) * 4
                    + (2 << 20))
    proj_vmem = min(max(proj_vmem, 4 << 20), 32 << 20)

    zs, zt, lpos = pl.pallas_call(
        _make_proj_kernel(temperature),
        grid=(n_pad // tq,),
        in_specs=[pl.BlockSpec((tq, s_dim), lambda i: (i, 0)),
                  pl.BlockSpec((tq, t_dim), lambda i: (i, 0))] + weight_specs,
        out_specs=[pl.BlockSpec((tq, feat_pad), lambda i: (i, 0)),
                   pl.BlockSpec((tq, feat_pad), lambda i: (i, 0)),
                   pl.BlockSpec((tq, 1), lambda i: (i, 0))],
        out_shape=[jax.ShapeDtypeStruct((n_pad, feat_pad), cdtype),
                   jax.ShapeDtypeStruct((n_pad, feat_pad), cdtype),
                   jax.ShapeDtypeStruct((n_pad, 1), jnp.float32)],
        compiler_params=pltpu.CompilerParams(
            dimension_semantics=("parallel",),
            vmem_limit_bytes=proj_vmem),
        cost_estimate=pl.CostEstimate(
            flops=int(proj_flops),
            transcendentals=int(2 * n_pad),
            bytes_accessed=int(proj_bytes)),
    )(f_s, f_t, *weights)

    # ---- call 2: flash-style online-LSE over (query tile, key tile) --------
    num_k = n_pad // tk
    flash_flops = 2 * n_pad * n_pad * feat_pad + 6 * n_pad * n_pad
    flash_trans = n_pad * n_pad + 2 * n_pad * num_k
    flash_bytes = (n_pad * feat_pad * itemsize
                   + (n_pad // tq) * n_pad * feat_pad * itemsize
                   + 2 * n_pad * 4)
    flash_vmem = int(2 * (tq + tk) * feat_pad * itemsize   # double-buffered z tiles
                     + 4 * tq * tk * 4                      # score/exp temporaries
                     + 4 * tq * 4 * 4
                     + (2 << 20))
    flash_vmem = min(max(flash_vmem, 4 << 20), 32 << 20)

    per_sample = pl.pallas_call(
        _make_nce_kernel(tk, n, n_pad),
        grid=(n_pad // tq, num_k),
        in_specs=[pl.BlockSpec((tq, 1), lambda qi, ki: (qi, 0)),          # l_pos
                  pl.BlockSpec((tq, feat_pad), lambda qi, ki: (qi, 0)),   # z_s (query)
                  pl.BlockSpec((tk, feat_pad), lambda qi, ki: (ki, 0))],  # z_t (keys)
        out_specs=pl.BlockSpec((tq, 1), lambda qi, ki: (qi, 0)),
        out_shape=jax.ShapeDtypeStruct((n_pad, 1), jnp.float32),
        scratch_shapes=[pltpu.VMEM((tq, 1), jnp.float32),   # running max
                        pltpu.VMEM((tq, 1), jnp.float32)],  # running sum
        compiler_params=pltpu.CompilerParams(
            dimension_semantics=("parallel", "arbitrary"),
            vmem_limit_bytes=flash_vmem),
        cost_estimate=pl.CostEstimate(
            flops=int(flash_flops),
            transcendentals=int(flash_trans),
            bytes_accessed=int(flash_bytes)),
    )(lpos, zs, zt)

    # mean over the valid (un-padded) rows
    return jnp.sum(per_sample[:n, 0]) / n


# ---------------------------------------------------------------------------
# Pure-JAX reference mirroring the PyTorch module (for verification)
# ---------------------------------------------------------------------------
def crd_loss_ref(f_s, f_t, params_s, params_t, temperature, eps=1e-12):
    def project(x, p):
        h = jnp.maximum(x @ p["w1"].T + p["b1"], 0.0)
        z = h @ p["w2"].T + p["b2"]
        return z / jnp.maximum(jnp.linalg.norm(z, axis=1, keepdims=True), eps)

    z_s = project(f_s, params_s)
    z_t = project(f_t, params_t)
    n = z_s.shape[0]
    l_pos = jnp.sum(z_s * z_t, axis=1, keepdims=True)
    l_neg = z_s @ z_t.T
    l_neg = jnp.where(jnp.eye(n, dtype=bool), -jnp.inf, l_neg)
    logits = jnp.concatenate([l_pos, l_neg], axis=1) / temperature
    lse = jax.scipy.special.logsumexp(logits, axis=1)
    return jnp.mean(lse - logits[:, 0])


if __name__ == "__main__":
    # opt_crd_params: s_dim=32, t_dim=64, feat_dim=16, nce_t=0.07
    # TODO(synk): the provided NCELoss uses in-batch negatives (N x N); a
    # ContrastMemory-bank variant (N x nce_n) would stream bank tiles instead.
    batch, s_dim, t_dim, feat_dim, nce_t = 8, 32, 64, 16, 0.07

    key = jax.random.PRNGKey(0)
    k_fs, k_ft, k_ps, k_pt = jax.random.split(key, 4)
    f_s = jax.random.normal(k_fs, (batch, s_dim), jnp.float32)
    f_t = jax.random.normal(k_ft, (batch, t_dim), jnp.float32)
    params_s = init_projection_head(k_ps, s_dim, feat_dim)
    params_t = init_projection_head(k_pt, t_dim, feat_dim)

    # One-time parameter preparation (transpose + 128-lane padding).
    # (use dtype=jnp.bfloat16 on v6e/v7x for the MXU fast path; keep f32 here
    #  so the 1e-4 check against the f32 reference is meaningful)
    packed = prepare_crd_params(params_s, params_t, dtype=jnp.float32)

    loss = jax.block_until_ready(crd_loss_pallas(f_s, f_t, packed, nce_t))
    ref = jax.block_until_ready(crd_loss_ref(f_s, f_t, params_s, params_t, nce_t))

    assert jnp.isfinite(loss), f"non-finite loss: {loss}"
    assert jnp.allclose(loss, ref, rtol=1e-4, atol=1e-4), (loss, ref)
    print("KERNEL_OK")
</pallas_src>

<mosaic_0001>
module attributes {stable_mosaic.version = 11 : i64} {
  func.func @kernel(%arg0: i32, %arg1: i32, %arg2: memref<8x1xf32, #tpu.memory_space<vmem>>, %arg3: memref<8x128xf32, #tpu.memory_space<vmem>>, %arg4: memref<8x128xf32, #tpu.memory_space<vmem>>, %arg5: memref<8x1xf32, #tpu.memory_space<vmem>>, %arg6: memref<8x1xf32, #tpu.memory_space<vmem>>, %arg7: memref<8x1xf32, #tpu.memory_space<vmem>>) attributes {dimension_semantics = [#tpu.dimension_semantics<parallel>, #tpu.dimension_semantics<arbitrary>], iteration_bounds = array<i64: 1, 1>, scalar_prefetch = 0 : i64, scratch_operands = 2 : i64, tpu.core_type = #tpu.core_type<tc>, window_params = [{transform_indices = @transform_0, window_bounds = array<i64: 8, 1>}, {transform_indices = @transform_1, window_bounds = array<i64: 8, 128>}, {transform_indices = @transform_2, window_bounds = array<i64: 8, 128>}, {transform_indices = @transform_3, window_bounds = array<i64: 8, 1>}]} {
    %c0_i32 = arith.constant 0 : i32
    %0 = arith.cmpi eq, %arg1, %c0_i32 : i32
    %1 = arith.extui %0 : i1 to i32
    %c0_i32_0 = arith.constant 0 : i32
    %2 = arith.cmpi ne, %1, %c0_i32_0 : i32
    scf.if %2 {
      %cst_16 = arith.constant 0xFF800000 : f32
      %25 = vector.broadcast %cst_16 : f32 to vector<8x1xf32>
      %c0_17 = arith.constant 0 : index
      %c0_18 = arith.constant 0 : index
      %26 = vector.load %arg6[%c0_17, %c0_18] : memref<8x1xf32, #tpu.memory_space<vmem>>, vector<8x1xf32>
      tpu.vector_store %arg6[%c0_17, %c0_18], %25 {strides = array<i32>} : memref<8x1xf32, #tpu.memory_space<vmem>>, vector<8x1xf32>,
      %cst_19 = arith.constant 0.000000e+00 : f32
      %27 = vector.broadcast %cst_19 : f32 to vector<8x1xf32>
      %c0_20 = arith.constant 0 : index
      %c0_21 = arith.constant 0 : index
      %28 = vector.load %arg7[%c0_20, %c0_21] : memref<8x1xf32, #tpu.memory_space<vmem>>, vector<8x1xf32>
      tpu.vector_store %arg7[%c0_20, %c0_21], %27 {strides = array<i32>} : memref<8x1xf32, #tpu.memory_space<vmem>>, vector<8x1xf32>,
    } else {
    }
    %c0 = arith.constant 0 : index
    %c0_1 = arith.constant 0 : index
    %3 = vector.load %arg3[%c0, %c0_1] : memref<8x128xf32, #tpu.memory_space<vmem>>, vector<8x128xf32>
    %c0_2 = arith.constant 0 : index
    %c0_3 = arith.constant 0 : index
    %4 = vector.load %arg4[%c0_2, %c0_3] : memref<8x128xf32, #tpu.memory_space<vmem>>, vector<8x128xf32>
    %cst = arith.constant dense<0.000000e+00> : vector<8x8xf32>
    %5 = tpu.matmul %3, %4, %cst {dimension_numbers = #tpu.dot_dimension_numbers<[1], [1], [0], [0], [0, 0, 1, 0], [], []>} : vector<8x128xf32>, vector<8x128xf32>, vector<8x8xf32> -> vector<8x8xf32>
    %c0_4 = arith.constant 0 : index
    %c0_5 = arith.constant 0 : index
    %6 = vector.load %arg6[%c0_4, %c0_5] : memref<8x1xf32, #tpu.memory_space<vmem>>, vector<8x1xf32>
    %cst_6 = arith.constant dense<0xFF800000> : vector<8xf32>
    %7 = vector.multi_reduction <maximumf>, %5, %cst_6 [1] : vector<8x8xf32> to vector<8xf32>
    %8 = vector.shape_cast %7 : vector<8xf32> to vector<8x1xf32>
    %9 = arith.maximumf %6, %8 : vector<8x1xf32>
    %10 = arith.subf %6, %9 : vector<8x1xf32>
    %11 = math.exp %10 : vector<8x1xf32>
    %12 = vector.broadcast %9 : vector<8x1xf32> to vector<8x8xf32>
    %13 = arith.subf %5, %12 : vector<8x8xf32>
    %14 = math.exp %13 : vector<8x8xf32>
    %c0_7 = arith.constant 0 : index
    %c0_8 = arith.constant 0 : index
    %15 = vector.load %arg7[%c0_7, %c0_8] : memref<8x1xf32, #tpu.memory_space<vmem>>, vector<8x1xf32>
    %16 = arith.mulf %11, %15 : vector<8x1xf32>
    %cst_9 = arith.constant dense<0.000000e+00> : vector<8xf32>
    %17 = vector.multi_reduction <add>, %14, %cst_9 [1] : vector<8x8xf32> to vector<8xf32>
    %18 = vector.shape_cast %17 : vector<8xf32> to vector<8x1xf32>
    %19 = arith.addf %16, %18 : vector<8x1xf32>
    %c0_10 = arith.constant 0 : index
    %c0_11 = arith.constant 0 : index
    %20 = vector.load %arg7[%c0_10, %c0_11] : memref<8x1xf32, #tpu.memory_space<vmem>>, vector<8x1xf32>
    tpu.vector_store %arg7[%c0_10, %c0_11], %19 {strides = array<i32>} : memref<8x1xf32, #tpu.memory_space<vmem>>, vector<8x1xf32>,
    %c0_12 = arith.constant 0 : index
    %c0_13 = arith.constant 0 : index
    %21 = vector.load %arg6[%c0_12, %c0_13] : memref<8x1xf32, #tpu.memory_space<vmem>>, vector<8x1xf32>
    tpu.vector_store %arg6[%c0_12, %c0_13], %9 {strides = array<i32>} : memref<8x1xf32, #tpu.memory_space<vmem>>, vector<8x1xf32>,
    %c0_i32_14 = arith.constant 0 : i32
    %22 = arith.cmpi eq, %arg1, %c0_i32_14 : i32
    %23 = arith.extui %22 : i1 to i32
    %c0_i32_15 = arith.constant 0 : i32
    %24 = arith.cmpi ne, %23, %c0_i32_15 : i32
    scf.if %24 {
      %c0_16 = arith.constant 0 : index
      %c0_17 = arith.constant 0 : index
      %25 = vector.load %arg6[%c0_16, %c0_17] : memref<8x1xf32, #tpu.memory_space<vmem>>, vector<8x1xf32>
      %c0_18 = arith.constant 0 : index
      %c0_19 = arith.constant 0 : index
      %26 = vector.load %arg7[%c0_18, %c0_19] : memref<8x1xf32, #tpu.memory_space<vmem>>, vector<8x1xf32>
      %27 = math.log %26 : vector<8x1xf32>
      %28 = arith.addf %25, %27 : vector<8x1xf32>
      %c0_20 = arith.constant 0 : index
      %c0_21 = arith.constant 0 : index
      %29 = vector.load %arg2[%c0_20, %c0_21] : memref<8x1xf32, #tpu.memory_space<vmem>>, vector<8x1xf32>
      %30 = arith.subf %28, %29 : vector<8x1xf32>
      %c0_22 = arith.constant 0 : index
      %c0_23 = arith.constant 0 : index
      %31 = vector.load %arg5[%c0_22, %c0_23] : memref<8x1xf32, #tpu.memory_space<vmem>>, vector<8x1xf32>
      tpu.vector_store %arg5[%c0_22, %c0_23], %30 {strides = array<i32>} : memref<8x1xf32, #tpu.memory_space<vmem>>, vector<8x1xf32>,
    } else {
    }
    return
  }
  func.func @transform_0(%arg0: i32, %arg1: i32) -> (i32, i32) {
    %c0_i32 = arith.constant 0 : i32
    %c0_i32_0 = arith.constant 0 : i32
    return %arg0, %c0_i32 : i32, i32
  }
  func.func @transform_1(%arg0: i32, %arg1: i32) -> (i32, i32) {
    %c0_i32 = arith.constant 0 : i32
    %c0_i32_0 = arith.constant 0 : i32
    return %arg0, %c0_i32 : i32, i32
  }
  func.func @transform_2(%arg0: i32, %arg1: i32) -> (i32, i32) {
    %c0_i32 = arith.constant 0 : i32
    %c0_i32_0 = arith.constant 0 : i32
    return %arg1, %c0_i32 : i32, i32
  }
  func.func @transform_3(%arg0: i32, %arg1: i32) -> (i32, i32) {
    %c0_i32 = arith.constant 0 : i32
    %c0_i32_0 = arith.constant 0 : i32
    return %arg0, %c0_i32 : i32, i32
  }
}

module attributes {stable_mosaic.version = 11 : i64} {
  func.func @kernel(%arg0: i32, %arg1: memref<8x32xf32, #tpu.memory_space<vmem>>, %arg2: memref<8x64xf32, #tpu.memory_space<vmem>>, %arg3: memref<32x128xf32, #tpu.memory_space<vmem>>, %arg4: memref<1x128xf32, #tpu.memory_space<vmem>>, %arg5: memref<128x128xf32, #tpu.memory_space<vmem>>, %arg6: memref<1x128xf32, #tpu.memory_space<vmem>>, %arg7: memref<64x128xf32, #tpu.memory_space<vmem>>, %arg8: memref<1x128xf32, #tpu.memory_space<vmem>>, %arg9: memref<128x128xf32, #tpu.memory_space<vmem>>, %arg10: memref<1x128xf32, #tpu.memory_space<vmem>>, %arg11: memref<8x128xf32, #tpu.memory_space<vmem>>, %arg12: memref<8x128xf32, #tpu.memory_space<vmem>>, %arg13: memref<8x1xf32, #tpu.memory_space<vmem>>) attributes {dimension_semantics = [#tpu.dimension_semantics<parallel>], iteration_bounds = array<i64: 1>, scalar_prefetch = 0 : i64, scratch_operands = 0 : i64, tpu.core_type = #tpu.core_type<tc>, window_params = [{transform_indices = @transform_0, window_bounds = array<i64: 8, 32>}, {transform_indices = @transform_1, window_bounds = array<i64: 8, 64>}, {pipeline_mode = #tpu.pipeline_mode<synchronous>, transform_indices = @transform_2, window_bounds = array<i64: 32, 128>}, {pipeline_mode = #tpu.pipeline_mode<synchronous>, transform_indices = @transform_3, window_bounds = array<i64: 1, 128>}, {pipeline_mode = #tpu.pipeline_mode<synchronous>, transform_indices = @transform_4, window_bounds = array<i64: 128, 128>}, {pipeline_mode = #tpu.pipeline_mode<synchronous>, transform_indices = @transform_5, window_bounds = array<i64: 1, 128>}, {pipeline_mode = #tpu.pipeline_mode<synchronous>, transform_indices = @transform_6, window_bounds = array<i64: 64, 128>}, {pipeline_mode = #tpu.pipeline_mode<synchronous>, transform_indices = @transform_7, window_bounds = array<i64: 1, 128>}, {pipeline_mode = #tpu.pipeline_mode<synchronous>, transform_indices = @transform_8, window_bounds = array<i64: 128, 128>}, {pipeline_mode = #tpu.pipeline_mode<synchronous>, transform_indices = @transform_9, window_bounds = array<i64: 1, 128>}, {transform_indices = @transform_10, window_bounds = array<i64: 8, 128>}, {transform_indices = @transform_11, window_bounds = array<i64: 8, 128>}, {transform_indices = @transform_12, window_bounds = array<i64: 8, 1>}]} {
    %c0 = arith.constant 0 : index
    %c0_0 = arith.constant 0 : index
    %0 = vector.load %arg1[%c0, %c0_0] : memref<8x32xf32, #tpu.memory_space<vmem>>, vector<8x32xf32>
    %c0_1 = arith.constant 0 : index
    %c0_2 = arith.constant 0 : index
    %1 = vector.load %arg3[%c0_1, %c0_2] : memref<32x128xf32, #tpu.memory_space<vmem>>, vector<32x128xf32>
    %cst = arith.constant dense<0.000000e+00> : vector<8x128xf32>
    %2 = tpu.matmul %0, %1, %cst {dimension_numbers = #tpu.dot_dimension_numbers<[1], [0], [0], [1], [0, 0, 1, 1], [], []>} : vector<8x32xf32>, vector<32x128xf32>, vector<8x128xf32> -> vector<8x128xf32>
    %c0_3 = arith.constant 0 : index
    %c0_4 = arith.constant 0 : index
    %3 = vector.load %arg4[%c0_3, %c0_4] : memref<1x128xf32, #tpu.memory_space<vmem>>, vector<1x128xf32>
    %4 = vector.broadcast %3 : vector<1x128xf32> to vector<8x128xf32>
    %5 = arith.addf %2, %4 : vector<8x128xf32>
    %cst_5 = arith.constant 0.000000e+00 : f32
    %6 = vector.broadcast %cst_5 : f32 to vector<8x128xf32>
    %7 = arith.maximumf %5, %6 : vector<8x128xf32>
    %c0_6 = arith.constant 0 : index
    %c0_7 = arith.constant 0 : index
    %8 = vector.load %arg5[%c0_6, %c0_7] : memref<128x128xf32, #tpu.memory_space<vmem>>, vector<128x128xf32>
    %cst_8 = arith.constant dense<0.000000e+00> : vector<8x128xf32>
    %9 = tpu.matmul %7, %8, %cst_8 {dimension_numbers = #tpu.dot_dimension_numbers<[1], [0], [0], [1], [0, 0, 1, 1], [], []>} : vector<8x128xf32>, vector<128x128xf32>, vector<8x128xf32> -> vector<8x128xf32>
    %c0_9 = arith.constant 0 : index
    %c0_10 = arith.constant 0 : index
    %10 = vector.load %arg6[%c0_9, %c0_10] : memref<1x128xf32, #tpu.memory_space<vmem>>, vector<1x128xf32>
    %11 = vector.broadcast %10 : vector<1x128xf32> to vector<8x128xf32>
    %12 = arith.addf %9, %11 : vector<8x128xf32>
    %13 = arith.mulf %12, %12 : vector<8x128xf32>
    %cst_11 = arith.constant dense<0.000000e+00> : vector<8xf32>
    %14 = vector.multi_reduction <add>, %13, %cst_11 [1] : vector<8x128xf32> to vector<8xf32>
    %15 = vector.shape_cast %14 : vector<8xf32> to vector<8x1xf32>
    %cst_12 = arith.constant 1.000000e-24 : f32
    %16 = vector.broadcast %cst_12 : f32 to vector<8x1xf32>
    %17 = arith.maximumf %15, %16 : vector<8x1xf32>
    %18 = math.rsqrt %17 : vector<8x1xf32>
    %19 = vector.broadcast %18 : vector<8x1xf32> to vector<8x128xf32>
    %20 = arith.mulf %12, %19 : vector<8x128xf32>
    %c0_13 = arith.constant 0 : index
    %c0_14 = arith.constant 0 : index
    %21 = vector.load %arg2[%c0_13, %c0_14] : memref<8x64xf32, #tpu.memory_space<vmem>>, vector<8x64xf32>
    %c0_15 = arith.constant 0 : index
    %c0_16 = arith.constant 0 : index
    %22 = vector.load %arg7[%c0_15, %c0_16] : memref<64x128xf32, #tpu.memory_space<vmem>>, vector<64x128xf32>
    %cst_17 = arith.constant dense<0.000000e+00> : vector<8x128xf32>
    %23 = tpu.matmul %21, %22, %cst_17 {dimension_numbers = #tpu.dot_dimension_numbers<[1], [0], [0], [1], [0, 0, 1, 1], [], []>} : vector<8x64xf32>, vector<64x128xf32>, vector<8x128xf32> -> vector<8x128xf32>
    %c0_18 = arith.constant 0 : index
    %c0_19 = arith.constant 0 : index
    %24 = vector.load %arg8[%c0_18, %c0_19] : memref<1x128xf32, #tpu.memory_space<vmem>>, vector<1x128xf32>
    %25 = vector.broadcast %24 : vector<1x128xf32> to vector<8x128xf32>
    %26 = arith.addf %23, %25 : vector<8x128xf32>
    %cst_20 = arith.constant 0.000000e+00 : f32
    %27 = vector.broadcast %cst_20 : f32 to vector<8x128xf32>
    %28 = arith.maximumf %26, %27 : vector<8x128xf32>
    %c0_21 = arith.constant 0 : index
    %c0_22 = arith.constant 0 : index
    %29 = vector.load %arg9[%c0_21, %c0_22] : memref<128x128xf32, #tpu.memory_space<vmem>>, vector<128x128xf32>
    %cst_23 = arith.constant dense<0.000000e+00> : vector<8x128xf32>
    %30 = tpu.matmul %28, %29, %cst_23 {dimension_numbers = #tpu.dot_dimension_numbers<[1], [0], [0], [1], [0, 0, 1, 1], [], []>} : vector<8x128xf32>, vector<128x128xf32>, vector<8x128xf32> -> vector<8x128xf32>
    %c0_24 = arith.constant 0 : index
    %c0_25 = arith.constant 0 : index
    %31 = vector.load %arg10[%c0_24, %c0_25] : memref<1x128xf32, #tpu.memory_space<vmem>>, vector<1x128xf32>
    %32 = vector.broadcast %31 : vector<1x128xf32> to vector<8x128xf32>
    %33 = arith.addf %30, %32 : vector<8x128xf32>
    %34 = arith.mulf %33, %33 : vector<8x128xf32>
    %cst_26 = arith.constant dense<0.000000e+00> : vector<8xf32>
    %35 = vector.multi_reduction <add>, %34, %cst_26 [1] : vector<8x128xf32> to vector<8xf32>
    %36 = vector.shape_cast %35 : vector<8xf32> to vector<8x1xf32>
    %cst_27 = arith.constant 1.000000e-24 : f32
    %37 = vector.broadcast %cst_27 : f32 to vector<8x1xf32>
    %38 = arith.maximumf %36, %37 : vector<8x1xf32>
    %39 = math.rsqrt %38 : vector<8x1xf32>
    %40 = vector.broadcast %39 : vector<8x1xf32> to vector<8x128xf32>
    %41 = arith.mulf %33, %40 : vector<8x128xf32>
    %42 = arith.mulf %20, %41 : vector<8x128xf32>
    %cst_28 = arith.constant dense<0.000000e+00> : vector<8xf32>
    %43 = vector.multi_reduction <add>, %42, %cst_28 [1] : vector<8x128xf32> to vector<8xf32>
    %44 = vector.shape_cast %43 : vector<8xf32> to vector<8x1xf32>
    %cst_29 = arith.constant 14.2857141 : f32
    %45 = vector.broadcast %cst_29 : f32 to vector<8x1xf32>
    %46 = arith.mulf %44, %45 : vector<8x1xf32>
    %c0_30 = arith.constant 0 : index
    %c0_31 = arith.constant 0 : index
    %47 = vector.load %arg13[%c0_30, %c0_31] : memref<8x1xf32, #tpu.memory_space<vmem>>, vector<8x1xf32>
    tpu.vector_store %arg13[%c0_30, %c0_31], %46 {strides = array<i32>} : memref<8x1xf32, #tpu.memory_space<vmem>>, vector<8x1xf32>,
    %cst_32 = arith.constant 14.2857141 : f32
    %48 = vector.broadcast %cst_32 : f32 to vector<8x128xf32>
    %49 = arith.mulf %20, %48 : vector<8x128xf32>
    %c0_33 = arith.constant 0 : index
    %c0_34 = arith.constant 0 : index
    %50 = vector.load %arg11[%c0_33, %c0_34] : memref<8x128xf32, #tpu.memory_space<vmem>>, vector<8x128xf32>
    tpu.vector_store %arg11[%c0_33, %c0_34], %49 {strides = array<i32>} : memref<8x128xf32, #tpu.memory_space<vmem>>, vector<8x128xf32>,
    %c0_35 = arith.constant 0 : index
    %c0_36 = arith.constant 0 : index
    %51 = vector.load %arg12[%c0_35, %c0_36] : memref<8x128xf32, #tpu.memory_space<vmem>>, vector<8x128xf32>
    tpu.vector_store %arg12[%c0_35, %c0_36], %41 {strides = array<i32>} : memref<8x128xf32, #tpu.memory_space<vmem>>, vector<8x128xf32>,
    return
  }
  func.func @transform_0(%arg0: i32) -> (i32, i32) {
    %c0_i32 = arith.constant 0 : i32
    %c0_i32_0 = arith.constant 0 : i32
    return %arg0, %c0_i32 : i32, i32
  }
  func.func @transform_1(%arg0: i32) -> (i32, i32) {
    %c0_i32 = arith.constant 0 : i32
    %c0_i32_0 = arith.constant 0 : i32
    return %arg0, %c0_i32 : i32, i32
  }
  func.func @transform_2(%arg0: i32) -> (i32, i32) {
    %c0_i32 = arith.constant 0 : i32
    %c0_i32_0 = arith.constant 0 : i32
    %c0_i32_1 = arith.constant 0 : i32
    return %c0_i32, %c0_i32_0 : i32, i32
  }
  func.func @transform_3(%arg0: i32) -> (i32, i32) {
    %c0_i32 = arith.constant 0 : i32
    %c0_i32_0 = arith.constant 0 : i32
    %c0_i32_1 = arith.constant 0 : i32
    return %c0_i32, %c0_i32_0 : i32, i32
  }
  func.func @transform_4(%arg0: i32) -> (i32, i32) {
    %c0_i32 = arith.constant 0 : i32
    %c0_i32_0 = arith.constant 0 : i32
    %c0_i32_1 = arith.constant 0 : i32
    return %c0_i32, %c0_i32_0 : i32, i32
  }
  func.func @transform_5(%arg0: i32) -> (i32, i32) {
    %c0_i32 = arith.constant 0 : i32
    %c0_i32_0 = arith.constant 0 : i32
    %c0_i32_1 = arith.constant 0 : i32
    return %c0_i32, %c0_i32_0 : i32, i32
  }
  func.func @transform_6(%arg0: i32) -> (i32, i32) {
    %c0_i32 = arith.constant 0 : i32
    %c0_i32_0 = arith.constant 0 : i32
    %c0_i32_1 = arith.constant 0 : i32
    return %c0_i32, %c0_i32_0 : i32, i32
  }
  func.func @transform_7(%arg0: i32) -> (i32, i32) {
    %c0_i32 = arith.constant 0 : i32
    %c0_i32_0 = arith.constant 0 : i32
    %c0_i32_1 = arith.constant 0 : i32
    return %c0_i32, %c0_i32_0 : i32, i32
  }
  func.func @transform_8(%arg0: i32) -> (i32, i32) {
    %c0_i32 = arith.constant 0 : i32
    %c0_i32_0 = arith.constant 0 : i32
    %c0_i32_1 = arith.constant 0 : i32
    return %c0_i32, %c0_i32_0 : i32, i32
  }
  func.func @transform_9(%arg0: i32) -> (i32, i32) {
    %c0_i32 = arith.constant 0 : i32
    %c0_i32_0 = arith.constant 0 : i32
    %c0_i32_1 = arith.constant 0 : i32
    return %c0_i32, %c0_i32_0 : i32, i32
  }
  func.func @transform_10(%arg0: i32) -> (i32, i32) {
    %c0_i32 = arith.constant 0 : i32
    %c0_i32_0 = arith.constant 0 : i32
    return %arg0, %c0_i32 : i32, i32
  }
  func.func @transform_11(%arg0: i32) -> (i32, i32) {
    %c0_i32 = arith.constant 0 : i32
    %c0_i32_0 = arith.constant 0 : i32
    return %arg0, %c0_i32 : i32, i32
  }
  func.func @transform_12(%arg0: i32) -> (i32, i32) {
    %c0_i32 = arith.constant 0 : i32
    %c0_i32_0 = arith.constant 0 : i32
    return %arg0, %c0_i32 : i32, i32
  }
}

</mosaic_0001>

<llo_original>
// kernel: crd_loss_pallas.3
$region0: #{crd_loss_pallas.3}
  #allocation0 [shape = 'u32[]', space=smem, size = 0x4, offset = 0x4, fixed_abs, tag = 'smem constant byte address 0x4 - core index']
  #allocation1 [shape = 'u32[144,128]{1,0:T(1,128)}', space=vmem, size = 0x12000, scoped, tag = 'internal scratch']
  #allocation2 [shape = 'f32[8,1]{1,0:T(8,128)}', space=vmem, size = 0x1000, scoped, tag = 'scratch operand']
  #allocation3 [shape = 'f32[8,1]{1,0:T(8,128)}', space=vmem, size = 0x1000, scoped, tag = 'scratch operand']
  %s0 = inlined_call_operand.vmem [shape: f32[8,1], index: 0, kind: input, shape index: {}]
  %s1 = inlined_call_operand.vmem [shape: f32[8,128], index: 1, kind: input, shape index: {}]
  %s2 = inlined_call_operand.vmem [shape: f32[8,128], index: 2, kind: input, shape index: {}]
  %s3 = inlined_call_operand.vmem [shape: f32[8,1], index: 3, kind: output, shape index: {}]
  %s4 = sld [smem:[#allocation0]]
  $region30: #{crd_loss_pallas.3} parent=0
    _
  %s6 = ssub.s32 1, %s4
  %s7 = scalar_select 0, %s6, %s4
  // Predicated region
  $region2: #{crd_loss_pallas.3} parent=0 // pred_check
    _
  $region3: #{crd_loss_pallas.3} parent=0 // pred_check_branch
    %9 = sbr.rel (0) target = $region5
  $region4: #{crd_loss_pallas.3} parent=0 // pred_region
    _
  $region5: #{crd_loss_pallas.3} parent=0 // pred_fallthru
    _
  // Predicated region
  $region6: #{crd_loss_pallas.3} parent=0 // pred_check
    _
  $region7: #{crd_loss_pallas.3} parent=0 // pred_check_branch
    %11 = sbr.rel (0) target = $region9
  $region8: #{crd_loss_pallas.3} parent=0 // pred_region
    _
  $region9: #{crd_loss_pallas.3} parent=0 // pred_fallthru
    _
  // Predicated region
  $region10: #{crd_loss_pallas.3} parent=0 // pred_check
    _
  $region11: #{crd_loss_pallas.3} parent=0 // pred_check_branch
    %13 = sbr.rel (0) target = $region13
  $region12: #{crd_loss_pallas.3} parent=0 // pred_region
    _
  $region13: #{crd_loss_pallas.3} parent=0 // pred_fallthru
    _
  %p14 = scmp.eq.s32.totalorder 0, 0
  // Predicated region
  $region14: #{crd_loss_pallas.3} parent=0 // pred_check
    %p15 = pneg %p14
  $region15: #{crd_loss_pallas.3} parent=0 // pred_check_branch
    %17 = sbr.rel (%p15) target = $region17
  $region16: #{crd_loss_pallas.3} parent=0 // pred_region
    %vm18 = vcmask 7168
    %19 = vst.msk [vmem:[#allocation2] sm:$0xff] %vm18, -inf
    %20 = vst.msk [vmem:[#allocation3] sm:$0xff] %vm18, 0.0
  $region17: #{crd_loss_pallas.3} parent=0 // pred_fallthru
    _
  %v21 = vld [vmem:[%s1] sm:$0xff]
  %v22 = vld [vmem:[%s2] sm:$0xff]
  %23 = vmatprep.subr.mxu0 0.0
  %24 = vmatpush1.xpose.msra.mxu0 %v22
  %25 = vmatprep.subr.mxu0 0.0
  %26 = vmatpush1.xpose.msra.mxu0 0.0
  %27 = vmatprep.subr.mxu0 0.0
  %28 = vmatpush1.xpose.msra.mxu0 0.0
  %29 = vmatprep.subr.mxu0 0.0
  %30 = vmatpush1.xpose.msra.mxu0 0.0
  %31 = vmatprep.subr.mxu0 0.0
  %32 = vmatpush1.xpose.msra.mxu0 0.0
  %33 = vmatprep.subr.mxu0 0.0
  %34 = vmatpush1.xpose.msra.mxu0 0.0
  %35 = vmatprep.subr.mxu0 0.0
  %36 = vmatpush1.xpose.msra.mxu0 0.0
  %37 = vmatprep.subr.mxu0 0.0
  %38 = vmatpush1.xpose.msra.mxu0 0.0
  %39 = vmatprep.subr.mxu0 0.0
  %40 = vmatpush1.xpose.msra.mxu0 0.0
  %41 = vmatprep.subr.mxu0 0.0
  %42 = vmatpush1.xpose.msra.mxu0 0.0
  %43 = vmatprep.subr.mxu0 0.0
  %44 = vmatpush1.xpose.msra.mxu0 0.0
  %45 = vmatprep.subr.mxu0 0.0
  %46 = vmatpush1.xpose.msra.mxu0 0.0
  %47 = vmatprep.subr.mxu0 0.0
  %48 = vmatpush1.xpose.msra.mxu0 0.0
  %49 = vmatprep.subr.mxu0 0.0
  %50 = vmatpush1.xpose.msra.mxu0 0.0
  %51 = vmatprep.subr.mxu0 0.0
  %52 = vmatpush1.xpose.msra.mxu0 0.0
  %53 = vmatprep.subr.mxu0 0.0
  %54 = vmatpush1.xpose.msra.mxu0 0.0
  %55 = vmatprep.subr.mxu0 0.0
  %56 = vmatpush1.xpose.msra.mxu0 0.0
  %57 = vmatprep.subr.mxu0 0.0
  %58 = vmatpush1.xpose.msra.mxu0 0.0
  %59 = vmatprep.subr.mxu0 0.0
  %60 = vmatpush1.xpose.msra.mxu0 0.0
  %61 = vmatprep.subr.mxu0 0.0
  %62 = vmatpush1.xpose.msra.mxu0 0.0
  %63 = vmatprep.subr.mxu0 0.0
  %64 = vmatpush1.xpose.msra.mxu0 0.0
  %65 = vmatprep.subr.mxu0 0.0
  %66 = vmatpush1.xpose.msra.mxu0 0.0
  %67 = vmatprep.subr.mxu0 0.0
  %68 = vmatpush1.xpose.msra.mxu0 0.0
  %69 = vmatprep.subr.mxu0 0.0
  %70 = vmatpush1.xpose.msra.mxu0 0.0
  %71 = vmatprep.subr.mxu0 0.0
  %72 = vmatpush1.xpose.msra.mxu0 0.0
  %73 = vmatprep.subr.mxu0 0.0
  %74 = vmatpush1.xpose.msra.mxu0 0.0
  %75 = vmatprep.subr.mxu0 0.0
  %76 = vmatpush1.xpose.msra.mxu0 0.0
  %77 = vmatprep.subr.mxu0 0.0
  %78 = vmatpush1.xpose.msra.mxu0 0.0
  %79 = vmatprep.subr.mxu0 0.0
  %80 = vmatpush1.xpose.msra.mxu0 0.0
  %81 = vmatprep.subr.mxu0 0.0
  %82 = vmatpush1.xpose.msra.mxu0 0.0
  %83 = vmatprep.subr.mxu0 0.0
  %84 = vmatpush1.xpose.msra.mxu0 0.0
  %85 = vmatprep.subr.mxu0 0.0
  %86 = vmatpush1.xpose.msra.mxu0 0.0
  %87 = vmatprep.mubr.f32.mxu0 0.0
  %88 = vmatmul.mubr.f32.gmra.mrb[0].mxu0 %v21
  %v89 = vpop.f32.mrb[0].mxu0
  %v90 = vadd.f32 0.0, %v89
  %v91 = vpop.f32.mrb[0].mxu0
  %92 = vdwg.mxu0
  %v93 = vld [vmem:[#allocation2] sm:$0xff]
  %vm94 = vcmask 64512
  %v95 = vsel %vm94, %v90, -inf
  %96 = vmax.xlane.f32.xlu0 %v95
  %v97 = vpop.xlane.xlu0 %96
  %v98 = vmax.f32 %v93, %v97
  %v99 = vsub.f32 %v93, %v98
  %v100 = vmul.f32 %v99, 1.442695
  %v101 = vpow.pop %v100
  %103 = vset.pattern.permute.xlu0 0
  %104 = vperm.xlu0 %103, %v98
  %v105 = vpop.permute.xlu0 %104
  %v107 = vsub.f32 %v90, %v105
  %v108 = vmul.f32 %v107, 1.442695
  %v109 = vpow.pop %v108
  %v110 = vld [vmem:[#allocation3] sm:$0xff]
  %v111 = vmul.f32 %v101, %v110
  %v112 = vsel %vm94, %v109, 0.0
  %113 = vadd.xlane.f32.xlu0 %v112
  %v114 = vpop.xlane.xlu0 %113
  %v115 = vadd.f32 %v111, %v114
  %vm116 = vcmask 7168
  %117 = vst.msk [vmem:[#allocation3] sm:$0xff] %vm116, %v115
  %118 = vst.msk [vmem:[#allocation2] sm:$0xff] %vm116, %v98
  // Predicated region
  $region18: #{crd_loss_pallas.3} parent=0 // pred_check
    %p119 = pneg %p14
  $region19: #{crd_loss_pallas.3} parent=0 // pred_check_branch
    %121 = sbr.rel (%p119) target = $region21
  $region20: #{crd_loss_pallas.3} parent=0 // pred_region
    %v122 = vld [vmem:[#allocation2] sm:$0xff]
    %v123 = vld [vmem:[#allocation3] sm:$0xff]
    %v124 = vlog2.pop %v123
    %v125 = vmul.f32 %v124, 0.6931472
    %v126 = vadd.f32 %v122, %v125
    %v127 = vld [vmem:[%s0] sm:$0xff]
    %v128 = vsub.f32 %v126, %v127
    %129 = vst.msk [vmem:[%s3] sm:$0xff] %vm116, %v128
  $region21: #{crd_loss_pallas.3} parent=0 // pred_fallthru
    _
  // Predicated region
  $region22: #{crd_loss_pallas.3} parent=0 // pred_check
    _
  $region23: #{crd_loss_pallas.3} parent=0 // pred_check_branch
    %131 = sbr.rel (0) target = $region25
  $region24: #{crd_loss_pallas.3} parent=0 // pred_region
    _
  $region25: #{crd_loss_pallas.3} parent=0 // pred_fallthru
    _
  // Predicated region
  $region26: #{crd_loss_pallas.3} parent=0 // pred_check
    _
  $region27: #{crd_loss_pallas.3} parent=0 // pred_check_branch
    %133 = sbr.rel (0) target = $region29
  $region28: #{crd_loss_pallas.3} parent=0 // pred_region
    _
  $region29: #{crd_loss_pallas.3} parent=0 // pred_fallthru
    _

// kernel: crd_loss_pallas.2
$region0: #{crd_loss_pallas.2}
  #allocation0 [shape = 'u32[]', space=smem, size = 0x4, offset = 0x4, fixed_abs, tag = 'smem constant byte address 0x4 - core index']
  #allocation1 [shape = 'u32[144,128]{1,0:T(1,128)}', space=vmem, size = 0x12000, scoped, tag = 'internal scratch']
  %s0 = inlined_call_operand.hbm [shape: f32[8,32], index: 0, kind: input, shape index: {}]
  %s1 = inlined_call_operand.hbm [shape: f32[8,64], index: 1, kind: input, shape index: {}]
  %s2 = inlined_call_operand.hbm [shape: f32[32,128], index: 2, kind: input, shape index: {}]
  %s3 = inlined_call_operand.vmem [shape: f32[1,128], index: 3, kind: input, shape index: {}]
  %s4 = inlined_call_operand.hbm [shape: f32[128,128], index: 4, kind: input, shape index: {}]
  %s5 = inlined_call_operand.vmem [shape: f32[1,128], index: 5, kind: input, shape index: {}]
  %s6 = inlined_call_operand.hbm [shape: f32[64,128], index: 6, kind: input, shape index: {}]
  %s7 = inlined_call_operand.vmem [shape: f32[1,128], index: 7, kind: input, shape index: {}]
  %s8 = inlined_call_operand.hbm [shape: f32[128,128], index: 8, kind: input, shape index: {}]
  %s9 = inlined_call_operand.vmem [shape: f32[1,128], index: 9, kind: input, shape index: {}]
  %s10 = inlined_call_operand.vmem [shape: f32[8,128], index: 10, kind: output, shape index: {0}]
  %s11 = inlined_call_operand.vmem [shape: f32[8,128], index: 11, kind: output, shape index: {1}]
  %s12 = inlined_call_operand.vmem [shape: f32[8,1], index: 12, kind: output, shape index: {2}]
  %13 = xla_tuple %s10, %s11, %s12
  %s14 = sld [smem:[#allocation0]]
  $region90: #{crd_loss_pallas.2} parent=0
    _
  %s16 = ssub.s32 1, %s14
  %s17 = scalar_select 0, %s16, %s14
  $region1: #{crd_loss_pallas.2} parent=0
    #allocation2 [shape = 'u8[4096]{0}', space=vmem, size = 0x1000, scoped, tag = 'input window, operand 0, single buffered']
    #allocation3 [shape = 's32[1]{0}', space=sflag, size = 0x4, scoped, tag = 'scoped memory for crd_loss_pallas.2']
    #allocation4 [shape = 'u8[4096]{0}', space=vmem, size = 0x1000, scoped, tag = 'input window, operand 1, single buffered']
    #allocation5 [shape = 's32[1]{0}', space=sflag, size = 0x4, scoped, tag = 'scoped memory for crd_loss_pallas.2']
    #allocation6 [shape = 'u8[16384]{0}', space=vmem, size = 0x4000, scoped, tag = 'input window, operand 2, single buffered']
    #allocation7 [shape = 'u8[65536]{0}', space=vmem, size = 0x10000, scoped, tag = 'input window, operand 4, single buffered']
    #allocation8 [shape = 's32[1]{0}', space=sflag, size = 0x4, scoped, tag = 'scoped memory for crd_loss_pallas.2']
    #allocation9 [shape = 'u8[32768]{0}', space=vmem, size = 0x8000, scoped, tag = 'input window, operand 6, single buffered']
    #allocation10 [shape = 'u8[65536]{0}', space=vmem, size = 0x10000, scoped, tag = 'input window, operand 8, single buffered']
    #allocation11 [shape = 's32[1]{0}', space=sflag, size = 0x4, scoped, tag = 'scoped memory for crd_loss_pallas.2']
    %18 = vsyncpa [#allocation3], 0
    %19 = vsyncpa [#allocation5], 0
    %20 = vsyncpa [#allocation8], 0
    %21 = vsyncpa [#allocation11], 0
    // Predicated region
    $region2: #{crd_loss_pallas.2} parent=1 // pred_check
      _
    $region3: #{crd_loss_pallas.2} parent=1 // pred_check_branch
      %23 = sbr.rel (0) target = $region5
    $region4: #{crd_loss_pallas.2} parent=1 // pred_region
      %s25 = ssub.s32 128, 128
      %26 = vsyncadd [#allocation3], %s25
      %s28 = sshll.u32 [#allocation2], 4
      %s29 = int_to_ptr.vmem [resolvable:$true] %s28
      %31 = dma.hbm_to_vmem [thread:$0]  %s0, 128, %s29, [#allocation3]
    $region5: #{crd_loss_pallas.2} parent=1 // pred_fallthru
      _
    // Predicated region
    $region6: #{crd_loss_pallas.2} parent=1 // pred_check
      _
    $region7: #{crd_loss_pallas.2} parent=1 // pred_check_branch
      %33 = sbr.rel (0) target = $region9
    $region8: #{crd_loss_pallas.2} parent=1 // pred_region
      %s35 = ssub.s32 128, 128
      %36 = vsyncadd [#allocation5], %s35
      %s38 = sshll.u32 [#allocation4], 4
      %s39 = int_to_ptr.vmem [resolvable:$true] %s38
      %41 = dma.hbm_to_vmem [thread:$0]  %s1, 128, %s39, [#allocation5]
    $region9: #{crd_loss_pallas.2} parent=1 // pred_fallthru
      _
    // Predicated region
    $region10: #{crd_loss_pallas.2} parent=1 // pred_check
      _
    $region11: #{crd_loss_pallas.2} parent=1 // pred_check_branch
      %43 = sbr.rel (0) target = $region13
    $region12: #{crd_loss_pallas.2} parent=1 // pred_region
      %s45 = ssub.s32 512, 512
      %46 = vsyncadd [#allocation5], %s45
      %s47 = sshll.u32 [#allocation6], 4
      %s48 = int_to_ptr.vmem [resolvable:$true] %s47
      %53 = dma.hbm_to_vmem [thread:$0]  %s2, 512, %s48, [#allocation5], 128, 128, 8
    $region13: #{crd_loss_pallas.2} parent=1 // pred_fallthru
      _
    // Predicated region
    $region14: #{crd_loss_pallas.2} parent=1 // pred_check
      _
    $region15: #{crd_loss_pallas.2} parent=1 // pred_check_branch
      %55 = sbr.rel (0) target = $region17
    $region16: #{crd_loss_pallas.2} parent=1 // pred_region
      _
    $region17: #{crd_loss_pallas.2} parent=1 // pred_fallthru
      _
    // Predicated region
    $region18: #{crd_loss_pallas.2} parent=1 // pred_check
      _
    $region19: #{crd_loss_pallas.2} parent=1 // pred_check_branch
      %57 = sbr.rel (0) target = $region21
    $region20: #{crd_loss_pallas.2} parent=1 // pred_region
      %s59 = ssub.s32 2048, 2048
      %60 = vsyncadd [#allocation8], %s59
      %s61 = sshll.u32 [#allocation7], 4
      %s62 = int_to_ptr.vmem [resolvable:$true] %s61
      %67 = dma.hbm_to_vmem [thread:$0]  %s4, 2048, %s62, [#allocation8], 128, 128, 8
    $region21: #{crd_loss_pallas.2} parent=1 // pred_fallthru
      _
    // Predicated region
    $region22: #{crd_loss_pallas.2} parent=1 // pred_check
      _
    $region23: #{crd_loss_pallas.2} parent=1 // pred_check_branch
      %69 = sbr.rel (0) target = $region25
    $region24: #{crd_loss_pallas.2} parent=1 // pred_region
      _
    $region25: #{crd_loss_pallas.2} parent=1 // pred_fallthru
      _
    // Predicated region
    $region26: #{crd_loss_pallas.2} parent=1 // pred_check
      _
    $region27: #{crd_loss_pallas.2} parent=1 // pred_check_branch
      %71 = sbr.rel (0) target = $region29
    $region28: #{crd_loss_pallas.2} parent=1 // pred_region
      %s73 = ssub.s32 1024, 1024
      %74 = vsyncadd [#allocation8], %s73
      %s75 = sshll.u32 [#allocation9], 4
      %s76 = int_to_ptr.vmem [resolvable:$true] %s75
      %81 = dma.hbm_to_vmem [thread:$0]  %s6, 1024, %s76, [#allocation8], 128, 128, 8
    $region29: #{crd_loss_pallas.2} parent=1 // pred_fallthru
      _
    // Predicated region
    $region30: #{crd_loss_pallas.2} parent=1 // pred_check
      _
    $region31: #{crd_loss_pallas.2} parent=1 // pred_check_branch
      %83 = sbr.rel (0) target = $region33
    $region32: #{crd_loss_pallas.2} parent=1 // pred_region
      _
    $region33: #{crd_loss_pallas.2} parent=1 // pred_fallthru
      _
    // Predicated region
    $region34: #{crd_loss_pallas.2} parent=1 // pred_check
      _
    $region35: #{crd_loss_pallas.2} parent=1 // pred_check_branch
      %85 = sbr.rel (0) target = $region37
    $region36: #{crd_loss_pallas.2} parent=1 // pred_region
      %s87 = ssub.s32 2048, 2048
      %88 = vsyncadd [#allocation11], %s87
      %s89 = sshll.u32 [#allocation10], 4
      %s90 = int_to_ptr.vmem [resolvable:$true] %s89
      %95 = dma.hbm_to_vmem [thread:$0]  %s8, 2048, %s90, [#allocation11], 128, 128, 8
    $region37: #{crd_loss_pallas.2} parent=1 // pred_fallthru
      _
    // Predicated region
    $region38: #{crd_loss_pallas.2} parent=1 // pred_check
      _
    $region39: #{crd_loss_pallas.2} parent=1 // pred_check_branch
      %97 = sbr.rel (0) target = $region41
    $region40: #{crd_loss_pallas.2} parent=1 // pred_region
      _
    $region41: #{crd_loss_pallas.2} parent=1 // pred_fallthru
      _
    // Predicated region
    $region42: #{crd_loss_pallas.2} parent=1 // pred_check
      _
    $region43: #{crd_loss_pallas.2} parent=1 // pred_check_branch
      %99 = sbr.rel (0) target = $region45
    $region44: #{crd_loss_pallas.2} parent=1 // pred_region
      %100 = dma.done [#allocation3], 128
    $region45: #{crd_loss_pallas.2} parent=1 // pred_fallthru
      _
    // Predicated region
    $region46: #{crd_loss_pallas.2} parent=1 // pred_check
      _
    $region47: #{crd_loss_pallas.2} parent=1 // pred_check_branch
      %102 = sbr.rel (0) target = $region49
    $region48: #{crd_loss_pallas.2} parent=1 // pred_region
      %103 = dma.done [#allocation5], 128
    $region49: #{crd_loss_pallas.2} parent=1 // pred_fallthru
      _
    // Predicated region
    $region50: #{crd_loss_pallas.2} parent=1 // pred_check
      _
    $region51: #{crd_loss_pallas.2} parent=1 // pred_check_branch
      %105 = sbr.rel (0) target = $region53
    $region52: #{crd_loss_pallas.2} parent=1 // pred_region
      %106 = dma.done [#allocation5], 512
    $region53: #{crd_loss_pallas.2} parent=1 // pred_fallthru
      _
    // Predicated region
    $region54: #{crd_loss_pallas.2} parent=1 // pred_check
      _
    $region55: #{crd_loss_pallas.2} parent=1 // pred_check_branch
      %108 = sbr.rel (0) target = $region57
    $region56: #{crd_loss_pallas.2} parent=1 // pred_region
      %109 = dma.done [#allocation8], 2048
    $region57: #{crd_loss_pallas.2} parent=1 // pred_fallthru
      _
    // Predicated region
    $region58: #{crd_loss_pallas.2} parent=1 // pred_check
      _
    $region59: #{crd_loss_pallas.2} parent=1 // pred_check_branch
      %111 = sbr.rel (0) target = $region61
    $region60: #{crd_loss_pallas.2} parent=1 // pred_region
      %112 = dma.done [#allocation8], 1024
    $region61: #{crd_loss_pallas.2} parent=1 // pred_fallthru
      _
    // Predicated region
    $region62: #{crd_loss_pallas.2} parent=1 // pred_check
      _
    $region63: #{crd_loss_pallas.2} parent=1 // pred_check_branch
      %114 = sbr.rel (0) target = $region65
    $region64: #{crd_loss_pallas.2} parent=1 // pred_region
      %115 = dma.done [#allocation11], 2048
    $region65: #{crd_loss_pallas.2} parent=1 // pred_fallthru
      _
    %v116 = vld [vmem:[#allocation2] sm:$0xff]
    %v117 = vld [vmem:[#allocation6] sm:$0xff]
    %v118 = vld [vmem:[#allocation6 + $0x8] sm:$0xff]
    %v119 = vld [vmem:[#allocation6 + $0x10] sm:$0xff]
    %v120 = vld [vmem:[#allocation6 + $0x18] sm:$0xff]
    %v121 = vld [vmem:[%s3] sm:$0x1]
    %v123 = vlaneseq
    %v124 = vshrl.u32 %v123, 7
    %v125 = vsub.s32 0, %v124
    %v126 = vrot.slane %v121, %v125
    %vm128 = vcmask 261120
    %v130 = vsel %vm128, %v116, 0
    %132 = vmatprep.subr.mxu0 0.0
    %133 = vmatpush1.msra.mxu0 %v117
    %134 = vmatprep.subr.mxu0 0.0
    %135 = vmatpush1.msra.mxu0 %v118
    %136 = vmatprep.subr.mxu0 0.0
    %137 = vmatpush1.msra.mxu0 %v119
    %138 = vmatprep.subr.mxu0 0.0
    %139 = vmatpush1.msra.mxu0 %v120
    %140 = vmatprep.subr.mxu0 0.0
    %141 = vmatpush1.msra.mxu0 0.0
    %142 = vmatprep.subr.mxu0 0.0
    %143 = vmatpush1.msra.mxu0 0.0
    %144 = vmatprep.subr.mxu0 0.0
    %145 = vmatpush1.msra.mxu0 0.0
    %146 = vmatprep.subr.mxu0 0.0
    %147 = vmatpush1.msra.mxu0 0.0
    %148 = vmatprep.subr.mxu0 0.0
    %149 = vmatpush1.msra.mxu0 0.0
    %150 = vmatprep.subr.mxu0 0.0
    %151 = vmatpush1.msra.mxu0 0.0
    %152 = vmatprep.subr.mxu0 0.0
    %153 = vmatpush1.msra.mxu0 0.0
    %154 = vmatprep.subr.mxu0 0.0
    %155 = vmatpush1.msra.mxu0 0.0
    %156 = vmatprep.subr.mxu0 0.0
    %157 = vmatpush1.msra.mxu0 0.0
    %158 = vmatprep.subr.mxu0 0.0
    %159 = vmatpush1.msra.mxu0 0.0
    %160 = vmatprep.subr.mxu0 0.0
    %161 = vmatpush1.msra.mxu0 0.0
    %162 = vmatprep.subr.mxu0 0.0
    %163 = vmatpush1.msra.mxu0 0.0
    %164 = vmatprep.subr.mxu0 0.0
    %165 = vmatpush1.msra.mxu0 0.0
    %166 = vmatprep.subr.mxu0 0.0
    %167 = vmatpush1.msra.mxu0 0.0
    %168 = vmatprep.subr.mxu0 0.0
    %169 = vmatpush1.msra.mxu0 0.0
    %170 = vmatprep.subr.mxu0 0.0
    %171 = vmatpush1.msra.mxu0 0.0
    %172 = vmatprep.subr.mxu0 0.0
    %173 = vmatpush1.msra.mxu0 0.0
    %174 = vmatprep.subr.mxu0 0.0
    %175 = vmatpush1.msra.mxu0 0.0
    %176 = vmatprep.subr.mxu0 0.0
    %177 = vmatpush1.msra.mxu0 0.0
    %178 = vmatprep.subr.mxu0 0.0
    %179 = vmatpush1.msra.mxu0 0.0
    %180 = vmatprep.subr.mxu0 0.0
    %181 = vmatpush1.msra.mxu0 0.0
    %182 = vmatprep.subr.mxu0 0.0
    %183 = vmatpush1.msra.mxu0 0.0
    %184 = vmatprep.subr.mxu0 0.0
    %185 = vmatpush1.msra.mxu0 0.0
    %186 = vmatprep.subr.mxu0 0.0
    %187 = vmatpush1.msra.mxu0 0.0
    %188 = vmatprep.subr.mxu0 0.0
    %189 = vmatpush1.msra.mxu0 0.0
    %190 = vmatprep.subr.mxu0 0.0
    %191 = vmatpush1.msra.mxu0 0.0
    %192 = vmatprep.subr.mxu0 0.0
    %193 = vmatpush1.msra.mxu0 0.0
    %194 = vmatprep.subr.mxu0 0.0
    %195 = vmatpush1.msra.mxu0 0.0
    %196 = vmatprep.mubr.f32.mxu0 0.0
    %197 = vmatmul.mubr.f32.gmra.mrb[0].mxu0 %v130
    %v198 = vpop.f32.mrb[0].mxu0
    %v199 = vadd.f32 %v126, %v198
    %v200 = vpop.f32.mrb[0].mxu0
    %201 = vdwg.mxu0
    %v202 = vmax.f32 %v199, 0.0
    %v203 = vld [vmem:[#allocation7] sm:$0xff]
    %v204 = vld [vmem:[#allocation7 + $0x8] sm:$0xff]
    %v205 = vld [vmem:[#allocation7 + $0x10] sm:$0xff]
    %v206 = vld [vmem:[#allocation7 + $0x18] sm:$0xff]
    %v207 = vld [vmem:[#allocation7 + $0x20] sm:$0xff]
    %v208 = vld [vmem:[#allocation7 + $0x28] sm:$0xff]
    %v209 = vld [vmem:[#allocation7 + $0x30] sm:$0xff]
    %v210 = vld [vmem:[#allocation7 + $0x38] sm:$0xff]
    %v211 = vld [vmem:[#allocation7 + $0x40] sm:$0xff]
    %v212 = vld [vmem:[#allocation7 + $0x48] sm:$0xff]
    %v213 = vld [vmem:[#allocation7 + $0x50] sm:$0xff]
    %v214 = vld [vmem:[#allocation7 + $0x58] sm:$0xff]
    %v215 = vld [vmem:[#allocation7 + $0x60] sm:$0xff]
    %v216 = vld [vmem:[#allocation7 + $0x68] sm:$0xff]
    %v217 = vld [vmem:[#allocation7 + $0x70] sm:$0xff]
    %v218 = vld [vmem:[#allocation7 + $0x78] sm:$0xff]
    %v219 = vld [vmem:[%s5] sm:$0x1]
    %v221 = vlaneseq
    %v222 = vshrl.u32 %v221, 7
    %v223 = vsub.s32 0, %v222
    %v224 = vrot.slane %v219, %v223
    %226 = vmatprep.subr.mxu0 0.0
    %227 = vmatpush1.msra.mxu0 %v203
    %228 = vmatprep.subr.mxu0 0.0
    %229 = vmatpush1.msra.mxu0 %v204
    %230 = vmatprep.subr.mxu0 0.0
    %231 = vmatpush1.msra.mxu0 %v205
    %232 = vmatprep.subr.mxu0 0.0
    %233 = vmatpush1.msra.mxu0 %v206
    %234 = vmatprep.subr.mxu0 0.0
    %235 = vmatpush1.msra.mxu0 %v207
    %236 = vmatprep.subr.mxu0 0.0
    %237 = vmatpush1.msra.mxu0 %v208
    %238 = vmatprep.subr.mxu0 0.0
    %239 = vmatpush1.msra.mxu0 %v209
    %240 = vmatprep.subr.mxu0 0.0
    %241 = vmatpush1.msra.mxu0 %v210
    %242 = vmatprep.subr.mxu0 0.0
    %243 = vmatpush1.msra.mxu0 %v211
    %244 = vmatprep.subr.mxu0 0.0
    %245 = vmatpush1.msra.mxu0 %v212
    %246 = vmatprep.subr.mxu0 0.0
    %247 = vmatpush1.msra.mxu0 %v213
    %248 = vmatprep.subr.mxu0 0.0
    %249 = vmatpush1.msra.mxu0 %v214
    %250 = vmatprep.subr.mxu0 0.0
    %251 = vmatpush1.msra.mxu0 %v215
    %252 = vmatprep.subr.mxu0 0.0
    %253 = vmatpush1.msra.mxu0 %v216
    %254 = vmatprep.subr.mxu0 0.0
    %255 = vmatpush1.msra.mxu0 %v217
    %256 = vmatprep.subr.mxu0 0.0
    %257 = vmatpush1.msra.mxu0 %v218
    %258 = vmatprep.subr.mxu0 0.0
    %259 = vmatpush1.msra.mxu0 0.0
    %260 = vmatprep.subr.mxu0 0.0
    %261 = vmatpush1.msra.mxu0 0.0
    %262 = vmatprep.subr.mxu0 0.0
    %263 = vmatpush1.msra.mxu0 0.0
    %264 = vmatprep.subr.mxu0 0.0
    %265 = vmatpush1.msra.mxu0 0.0
    %266 = vmatprep.subr.mxu0 0.0
    %267 = vmatpush1.msra.mxu0 0.0
    %268 = vmatprep.subr.mxu0 0.0
    %269 = vmatpush1.msra.mxu0 0.0
    %270 = vmatprep.subr.mxu0 0.0
    %271 = vmatpush1.msra.mxu0 0.0
    %272 = vmatprep.subr.mxu0 0.0
    %273 = vmatpush1.msra.mxu0 0.0
    %274 = vmatprep.subr.mxu0 0.0
    %275 = vmatpush1.msra.mxu0 0.0
    %276 = vmatprep.subr.mxu0 0.0
    %277 = vmatpush1.msra.mxu0 0.0
    %278 = vmatprep.subr.mxu0 0.0
    %279 = vmatpush1.msra.mxu0 0.0
    %280 = vmatprep.subr.mxu0 0.0
    %281 = vmatpush1.msra.mxu0 0.0
    %282 = vmatprep.subr.mxu0 0.0
    %283 = vmatpush1.msra.mxu0 0.0
    %284 = vmatprep.subr.mxu0 0.0
    %285 = vmatpush1.msra.mxu0 0.0
    %286 = vmatprep.subr.mxu0 0.0
    %287 = vmatpush1.msra.mxu0 0.0
    %288 = vmatprep.subr.mxu0 0.0
    %289 = vmatpush1.msra.mxu0 0.0
    %290 = vmatprep.mubr.f32.mxu0 0.0
    %291 = vmatmul.mubr.f32.gmra.mrb[0].mxu0 %v202
    %v292 = vpop.f32.mrb[0].mxu0
    %v293 = vadd.f32 %v224, %v292
    %v294 = vpop.f32.mrb[0].mxu0
    %295 = vdwg.mxu0
    %v296 = vmul.f32 %v293, %v293
    %297 = vadd.xlane.f32.xlu0 %v296
    %v298 = vpop.xlane.xlu0 %297
    %v299 = vmax.f32 %v298, 1e-24
    %v300 = vrsqrt.pop %v299
    %v301 = vmul.f32 %v293, %v300
    %v302 = vld [vmem:[#allocation4] sm:$0xff]
    %v303 = vld [vmem:[#allocation9] sm:$0xff]
    %v304 = vld [vmem:[#allocation9 + $0x8] sm:$0xff]
    %v305 = vld [vmem:[#allocation9 + $0x10] sm:$0xff]
    %v306 = vld [vmem:[#allocation9 + $0x18] sm:$0xff]
    %v307 = vld [vmem:[#allocation9 + $0x20] sm:$0xff]
    %v308 = vld [vmem:[#allocation9 + $0x28] sm:$0xff]
    %v309 = vld [vmem:[#allocation9 + $0x30] sm:$0xff]
    %v310 = vld [vmem:[#allocation9 + $0x38] sm:$0xff]
    %v311 = vld [vmem:[%s7] sm:$0x1]
    %v313 = vlaneseq
    %v314 = vshrl.u32 %v313, 7
    %v315 = vsub.s32 0, %v314
    %v316 = vrot.slane %v311, %v315
    %vm318 = vcmask 523264
    %v320 = vsel %vm318, %v302, 0
    %322 = vmatprep.subr.mxu0 0.0
    %323 = vmatpush1.msra.mxu0 %v303
    %324 = vmatprep.subr.mxu0 0.0
    %325 = vmatpush1.msra.mxu0 %v304
    %326 = vmatprep.subr.mxu0 0.0
    %327 = vmatpush1.msra.mxu0 %v305
    %328 = vmatprep.subr.mxu0 0.0
    %329 = vmatpush1.msra.mxu0 %v306
    %330 = vmatprep.subr.mxu0 0.0
    %331 = vmatpush1.msra.mxu0 %v307
    %332 = vmatprep.subr.mxu0 0.0
    %333 = vmatpush1.msra.mxu0 %v308
    %334 = vmatprep.subr.mxu0 0.0
    %335 = vmatpush1.msra.mxu0 %v309
    %336 = vmatprep.subr.mxu0 0.0
    %337 = vmatpush1.msra.mxu0 %v310
    %338 = vmatprep.subr.mxu0 0.0
    %339 = vmatpush1.msra.mxu0 0.0
    %340 = vmatprep.subr.mxu0 0.0
    %341 = vmatpush1.msra.mxu0 0.0
    %342 = vmatprep.subr.mxu0 0.0
    %343 = vmatpush1.msra.mxu0 0.0
    %344 = vmatprep.subr.mxu0 0.0
    %345 = vmatpush1.msra.mxu0 0.0
    %346 = vmatprep.subr.mxu0 0.0
    %347 = vmatpush1.msra.mxu0 0.0
    %348 = vmatprep.subr.mxu0 0.0
    %349 = vmatpush1.msra.mxu0 0.0
    %350 = vmatprep.subr.mxu0 0.0
    %351 = vmatpush1.msra.mxu0 0.0
    %352 = vmatprep.subr.mxu0 0.0
    %353 = vmatpush1.msra.mxu0 0.0
    %354 = vmatprep.subr.mxu0 0.0
    %355 = vmatpush1.msra.mxu0 0.0
    %356 = vmatprep.subr.mxu0 0.0
    %357 = vmatpush1.msra.mxu0 0.0
    %358 = vmatprep.subr.mxu0 0.0
    %359 = vmatpush1.msra.mxu0 0.0
    %360 = vmatprep.subr.mxu0 0.0
    %361 = vmatpush1.msra.mxu0 0.0
    %362 = vmatprep.subr.mxu0 0.0
    %363 = vmatpush1.msra.mxu0 0.0
    %364 = vmatprep.subr.mxu0 0.0
    %365 = vmatpush1.msra.mxu0 0.0
    %366 = vmatprep.subr.mxu0 0.0
    %367 = vmatpush1.msra.mxu0 0.0
    %368 = vmatprep.subr.mxu0 0.0
    %369 = vmatpush1.msra.mxu0 0.0
    %370 = vmatprep.subr.mxu0 0.0
    %371 = vmatpush1.msra.mxu0 0.0
    %372 = vmatprep.subr.mxu0 0.0
    %373 = vmatpush1.msra.mxu0 0.0
    %374 = vmatprep.subr.mxu0 0.0
    %375 = vmatpush1.msra.mxu0 0.0
    %376 = vmatprep.subr.mxu0 0.0
    %377 = vmatpush1.msra.mxu0 0.0
    %378 = vmatprep.subr.mxu0 0.0
    %379 = vmatpush1.msra.mxu0 0.0
    %380 = vmatprep.subr.mxu0 0.0
    %381 = vmatpush1.msra.mxu0 0.0
    %382 = vmatprep.subr.mxu0 0.0
    %383 = vmatpush1.msra.mxu0 0.0
    %384 = vmatprep.subr.mxu0 0.0
    %385 = vmatpush1.msra.mxu0 0.0
    %386 = vmatprep.mubr.f32.mxu0 0.0
    %387 = vmatmul.mubr.f32.gmra.mrb[0].mxu0 %v320
    %v388 = vpop.f32.mrb[0].mxu0
    %v389 = vadd.f32 %v316, %v388
    %v390 = vpop.f32.mrb[0].mxu0
    %391 = vdwg.mxu0
    %v392 = vmax.f32 %v389, 0.0
    %v393 = vld [vmem:[#allocation10] sm:$0xff]
    %v394 = vld [vmem:[#allocation10 + $0x8] sm:$0xff]
    %v395 = vld [vmem:[#allocation10 + $0x10] sm:$0xff]
    %v396 = vld [vmem:[#allocation10 + $0x18] sm:$0xff]
    %v397 = vld [vmem:[#allocation10 + $0x20] sm:$0xff]
    %v398 = vld [vmem:[#allocation10 + $0x28] sm:$0xff]
    %v399 = vld [vmem:[#allocation10 + $0x30] sm:$0xff]
    %v400 = vld [vmem:[#allocation10 + $0x38] sm:$0xff]
    %v401 = vld [vmem:[#allocation10 + $0x40] sm:$0xff]
    %v402 = vld [vmem:[#allocation10 + $0x48] sm:$0xff]
    %v403 = vld [vmem:[#allocation10 + $0x50] sm:$0xff]
    %v404 = vld [vmem:[#allocation10 + $0x58] sm:$0xff]
    %v405 = vld [vmem:[#allocation10 + $0x60] sm:$0xff]
    %v406 = vld [vmem:[#allocation10 + $0x68] sm:$0xff]
    %v407 = vld [vmem:[#allocation10 + $0x70] sm:$0xff]
    %v408 = vld [vmem:[#allocation10 + $0x78] sm:$0xff]
    %v409 = vld [vmem:[%s9] sm:$0x1]
    %v411 = vlaneseq
    %v412 = vshrl.u32 %v411, 7
    %v413 = vsub.s32 0, %v412
    %v414 = vrot.slane %v409, %v413
    %416 = vmatprep.subr.mxu0 0.0
    %417 = vmatpush1.msra.mxu0 %v393
    %418 = vmatprep.subr.mxu0 0.0
    %419 = vmatpush1.msra.mxu0 %v394
    %420 = vmatprep.subr.mxu0 0.0
    %421 = vmatpush1.msra.mxu0 %v395
    %422 = vmatprep.subr.mxu0 0.0
    %423 = vmatpush1.msra.mxu0 %v396
    %424 = vmatprep.subr.mxu0 0.0
    %425 = vmatpush1.msra.mxu0 %v397
    %426 = vmatprep.subr.mxu0 0.0
    %427 = vmatpush1.msra.mxu0 %v398
    %428 = vmatprep.subr.mxu0 0.0
    %429 = vmatpush1.msra.mxu0 %v399
    %430 = vmatprep.subr.mxu0 0.0
    %431 = vmatpush1.msra.mxu0 %v400
    %432 = vmatprep.subr.mxu0 0.0
    %433 = vmatpush1.msra.mxu0 %v401
    %434 = vmatprep.subr.mxu0 0.0
    %435 = vmatpush1.msra.mxu0 %v402
    %436 = vmatprep.subr.mxu0 0.0
    %437 = vmatpush1.msra.mxu0 %v403
    %438 = vmatprep.subr.mxu0 0.0
    %439 = vmatpush1.msra.mxu0 %v404
    %440 = vmatprep.subr.mxu0 0.0
    %441 = vmatpush1.msra.mxu0 %v405
    %442 = vmatprep.subr.mxu0 0.0
    %443 = vmatpush1.msra.mxu0 %v406
    %444 = vmatprep.subr.mxu0 0.0
    %445 = vmatpush1.msra.mxu0 %v407
    %446 = vmatprep.subr.mxu0 0.0
    %447 = vmatpush1.msra.mxu0 %v408
    %448 = vmatprep.subr.mxu0 0.0
    %449 = vmatpush1.msra.mxu0 0.0
    %450 = vmatprep.subr.mxu0 0.0
    %451 = vmatpush1.msra.mxu0 0.0
    %452 = vmatprep.subr.mxu0 0.0
    %453 = vmatpush1.msra.mxu0 0.0
    %454 = vmatprep.subr.mxu0 0.0
    %455 = vmatpush1.msra.mxu0 0.0
    %456 = vmatprep.subr.mxu0 0.0
    %457 = vmatpush1.msra.mxu0 0.0
    %458 = vmatprep.subr.mxu0 0.0
    %459 = vmatpush1.msra.mxu0 0.0
    %460 = vmatprep.subr.mxu0 0.0
    %461 = vmatpush1.msra.mxu0 0.0
    %462 = vmatprep.subr.mxu0 0.0
    %463 = vmatpush1.msra.mxu0 0.0
    %464 = vmatprep.subr.mxu0 0.0
    %465 = vmatpush1.msra.mxu0 0.0
    %466 = vmatprep.subr.mxu0 0.0
    %467 = vmatpush1.msra.mxu0 0.0
    %468 = vmatprep.subr.mxu0 0.0
    %469 = vmatpush1.msra.mxu0 0.0
    %470 = vmatprep.subr.mxu0 0.0
    %471 = vmatpush1.msra.mxu0 0.0
    %472 = vmatprep.subr.mxu0 0.0
    %473 = vmatpush1.msra.mxu0 0.0
    %474 = vmatprep.subr.mxu0 0.0
    %475 = vmatpush1.msra.mxu0 0.0
    %476 = vmatprep.subr.mxu0 0.0
    %477 = vmatpush1.msra.mxu0 0.0
    %478 = vmatprep.subr.mxu0 0.0
    %479 = vmatpush1.msra.mxu0 0.0
    %480 = vmatprep.mubr.f32.mxu0 0.0
    %481 = vmatmul.mubr.f32.gmra.mrb[0].mxu0 %v392
    %v482 = vpop.f32.mrb[0].mxu0
    %v483 = vadd.f32 %v414, %v482
    %v484 = vpop.f32.mrb[0].mxu0
    %485 = vdwg.mxu0
    %v486 = vmul.f32 %v483, %v483
    %487 = vadd.xlane.f32.xlu0 %v486
    %v488 = vpop.xlane.xlu0 %487
    %v489 = vmax.f32 %v488, 1e-24
    %v490 = vrsqrt.pop %v489
    %v491 = vmul.f32 %v483, %v490
    %v492 = vmul.f32 %v301, %v491
    %493 = vadd.xlane.f32.xlu0 %v492
    %v494 = vpop.xlane.xlu0 %493
    %v495 = vmul.f32 %v494, 14.285714
    %vm496 = vcmask 7168
    %497 = vst.msk [vmem:[%s12] sm:$0xff] %vm496, %v495
    %v498 = vmul.f32 %v301, 14.285714
    %499 = vst [vmem:[%s10] sm:$0xff] %v498
    %500 = vst [vmem:[%s11] sm:$0xff] %v491
    // Predicated region
    $region66: #{crd_loss_pallas.2} parent=1 // pred_check
      _
    $region67: #{crd_loss_pallas.2} parent=1 // pred_check_branch
      %502 = sbr.rel (0) target = $region69
    $region68: #{crd_loss_pallas.2} parent=1 // pred_region
      _
    $region69: #{crd_loss_pallas.2} parent=1 // pred_fallthru
      _
    // Predicated region
    $region70: #{crd_loss_pallas.2} parent=1 // pred_check
      _
    $region71: #{crd_loss_pallas.2} parent=1 // pred_check_branch
      %504 = sbr.rel (0) target = $region73
    $region72: #{crd_loss_pallas.2} parent=1 // pred_region
      _
    $region73: #{crd_loss_pallas.2} parent=1 // pred_fallthru
      _
    // Predicated region
    $region74: #{crd_loss_pallas.2} parent=1 // pred_check
      _
    $region75: #{crd_loss_pallas.2} parent=1 // pred_check_branch
      %506 = sbr.rel (0) target = $region77
    $region76: #{crd_loss_pallas.2} parent=1 // pred_region
      _
    $region77: #{crd_loss_pallas.2} parent=1 // pred_fallthru
      _
    // Predicated region
    $region78: #{crd_loss_pallas.2} parent=1 // pred_check
      _
    $region79: #{crd_loss_pallas.2} parent=1 // pred_check_branch
      %508 = sbr.rel (0) target = $region81
    $region80: #{crd_loss_pallas.2} parent=1 // pred_region
      _
    $region81: #{crd_loss_pallas.2} parent=1 // pred_fallthru
      _
    // Predicated region
    $region82: #{crd_loss_pallas.2} parent=1 // pred_check
      _
    $region83: #{crd_loss_pallas.2} parent=1 // pred_check_branch
      %510 = sbr.rel (0) target = $region85
    $region84: #{crd_loss_pallas.2} parent=1 // pred_region
      _
    $region85: #{crd_loss_pallas.2} parent=1 // pred_fallthru
      _
    // Predicated region
    $region86: #{crd_loss_pallas.2} parent=1 // pred_check
      _
    $region87: #{crd_loss_pallas.2} parent=1 // pred_check_branch
      %512 = sbr.rel (0) target = $region89
    $region88: #{crd_loss_pallas.2} parent=1 // pred_region
      _
    $region89: #{crd_loss_pallas.2} parent=1 // pred_fallthru
      _
    %513 = vsyncpa [#allocation3], 1
    %514 = vsyncpa [#allocation5], 1
    %515 = vsyncpa [#allocation8], 1
    %516 = vsyncpa [#allocation11], 1

</llo_original>
